<compile_context>
chip_gen: v6e
topology: v6e:2x2x1
jax: 0.10.0
libtpu: 0.0.40
codegen_flags: <defaults>
</compile_context>

<pallas_src>
import functools
import math

import jax
import jax.numpy as jnp
from jax import lax
from jax.experimental import pallas as pl
from jax.experimental.pallas import tpu as pltpu


def _round_up(a, b):
    return ((a + b - 1) // b) * b


def mlp_kernel(x_ref, pk_ref, w2_ref, w3_ref, o_ref, *, chunk):
    # Resident params (same block every grid step -> stay in VMEM across iterations).
    pk = pk_ref[...]                       # (H, 8) f32 packed small params
    w1 = pk[:, 0:1]                        # (H, 1)
    b1 = pk[:, 1:2]
    b2 = pk[:, 2:3]
    b3 = pk[:, 3:4]
    w4 = pk[:, 4:5]
    b4 = pk[0:1, 5:6]                      # (1, 1)
    w2 = w2_ref[...]                       # (H, H) in matmul dtype (bf16 by default)
    w3 = w3_ref[...]
    mm_dtype = w2.dtype

    n_chunks = x_ref.shape[1] // chunk     # static

    def body(j, carry):
        off = pl.multiple_of(j * chunk, 128)
        x = x_ref[:, pl.ds(off, chunk)]                              # (1, chunk)

        # Layer 1: Linear(1, H) + ReLU.  K=1 -> VPU outer product, f32.
        h = jnp.maximum(w1 * x + b1, 0.0)                            # (H, chunk)

        # Layer 2: Linear(H, H) + ReLU.  Single-pass bf16 MXU, f32 accumulation.
        h = jnp.dot(w2, h.astype(mm_dtype), preferred_element_type=jnp.float32)
        h = jnp.maximum(h + b2, 0.0)

        # Layer 3: Linear(H, H) + ReLU.  Single-pass bf16 MXU, f32 accumulation.
        h = jnp.dot(w3, h.astype(mm_dtype), preferred_element_type=jnp.float32)
        h = jnp.maximum(h + b3, 0.0)

        # Layer 4: Linear(H, 1).  N=1 -> VPU multiply + sublane (XLU) reduction.
        out = jnp.sum(w4 * h, axis=0, keepdims=True) + b4            # (1, chunk)

        o_ref[:, pl.ds(off, chunk)] = out.astype(o_ref.dtype)
        return carry

    lax.fori_loop(0, n_chunks, body, 0, unroll=True)


def mlp_forward(x, packed, w2, w3, *, block_lanes=2048, chunk_lanes=512):
    """x: (N, 1) float32.  packed/w2/w3: output of pack_params()."""
    n = x.shape[0]
    hdim = packed.shape[0]

    n128 = _round_up(max(n, 1), 128)

    # v7x: guarantee >=2 grid steps when there is enough work so that
    # dimension_semantics=("parallel",) can shard batch tiles across both TensorCores.
    if n128 >= 256:
        tb = min(block_lanes, _round_up(pl.cdiv(n128, 2), 128))
    else:
        tb = n128
    chunk = min(chunk_lanes, tb)           # inner compute chunk (<=512 lanes, mult of 128)
    tb = (tb // chunk) * chunk             # streamed block = whole number of chunks
    n_pad = _round_up(n128, tb)
    grid = n_pad // tb

    # (N, 1) -> (1, N): pure reshape (feature dim is 1); batch moves to the lane axis.
    x_t = x.reshape(1, n)
    if n_pad != n:
        x_t = jnp.pad(x_t, ((0, 0), (0, n_pad - n)))

    def resident(rows, cols):
        # One block == whole array; same block every grid step -> stays resident in VMEM.
        return pl.BlockSpec((rows, cols), lambda i: (0, 0))

    out_t = pl.pallas_call(
        functools.partial(mlp_kernel, chunk=chunk),
        out_shape=jax.ShapeDtypeStruct((1, n_pad), jnp.float32),
        grid=(grid,),
        in_specs=[
            pl.BlockSpec((1, tb), lambda i: (0, i)),   # x tile (batch on lanes), streamed
            resident(hdim, 8),                         # packed {w1, b1, b2, b3, w4, b4}
            resident(hdim, hdim),                      # w2
            resident(hdim, hdim),                      # w3
        ],
        out_specs=pl.BlockSpec((1, tb), lambda i: (0, i)),
        compiler_params=pltpu.CompilerParams(
            dimension_semantics=("parallel",)),
    )(x_t, packed, w2, w3)

    return out_t[0, :n].reshape(n, 1)


def init_params(key, neural_num):
    """PyTorch-style nn.Linear init: U(-1/sqrt(fan_in), +1/sqrt(fan_in)).
    Returned in PyTorch layout: W:(out,in), b:(out,)."""
    dims = [(1, neural_num), (neural_num, neural_num),
            (neural_num, neural_num), (neural_num, 1)]   # (in_features, out_features)
    params = []
    for fan_in, fan_out in dims:
        key, kw, kb = jax.random.split(key, 3)
        bound = 1.0 / math.sqrt(fan_in)
        w = jax.random.uniform(kw, (fan_out, fan_in), jnp.float32, -bound, bound)
        b = jax.random.uniform(kb, (fan_out,), jnp.float32, -bound, bound)
        params.extend([w, b])
    return tuple(params)


def pack_params(params, matmul_dtype=jnp.bfloat16):
    """Convert PyTorch-layout params to the kernel's resident operands:
       packed (H, 8) f32 = [w1 | b1 | b2 | b3 | w4 | b4 | 0 | 0] (column-major form),
       w2, w3 (H, H) in `matmul_dtype` (bf16 for single-pass MXU; f32 for exact parity)."""
    W1, b1, W2, b2, W3, b3, W4, b4 = params
    hdim = W1.shape[0]
    packed = jnp.zeros((hdim, 8), jnp.float32)
    packed = packed.at[:, 0].set(W1[:, 0])   # w1
    packed = packed.at[:, 1].set(b1)         # b1
    packed = packed.at[:, 2].set(b2)         # b2
    packed = packed.at[:, 3].set(b3)         # b3
    packed = packed.at[:, 4].set(W4[0, :])   # w4 (= W4.T column)
    packed = packed.at[:, 5].set(b4[0])      # b4 (broadcast down the column)
    return packed, W2.astype(matmul_dtype), W3.astype(matmul_dtype)


def reference_matched(x, params, matmul_dtype=jnp.bfloat16):
    """Pure-JAX reference mirroring the kernel's arithmetic (bf16 MXU dots, f32 VPU)."""
    W1, b1, W2, b2, W3, b3, W4, b4 = params
    xt = x.reshape(1, -1)                                         # (1, N)
    h = jnp.maximum(W1 * xt + b1[:, None], 0.0)                   # (H, N) f32
    h = jnp.dot(W2.astype(matmul_dtype), h.astype(matmul_dtype),
                preferred_element_type=jnp.float32)
    h = jnp.maximum(h + b2[:, None], 0.0)
    h = jnp.dot(W3.astype(matmul_dtype), h.astype(matmul_dtype),
                preferred_element_type=jnp.float32)
    h = jnp.maximum(h + b3[:, None], 0.0)
    out = jnp.sum(W4[0][:, None] * h, axis=0, keepdims=True) + b4[0]
    return out.reshape(-1, 1)


def reference_f32(x, params):
    """Full-precision f32 PyTorch-style reference (semantics sanity check)."""
    W1, b1, W2, b2, W3, b3, W4, b4 = params
    hp = lax.Precision.HIGHEST
    h = jnp.maximum(jnp.dot(x, W1.T, precision=hp) + b1, 0.0)
    h = jnp.maximum(jnp.dot(h, W2.T, precision=hp) + b2, 0.0)
    h = jnp.maximum(jnp.dot(h, W3.T, precision=hp) + b3, 0.0)
    return jnp.dot(h, W4.T, precision=hp) + b4


if __name__ == "__main__":
    neural_num = 32   # hidden width

    key = jax.random.PRNGKey(0)
    key, k_small, k_mid, k_big = jax.random.split(key, 4)
    params = init_params(key, neural_num)
    packed, w2, w3 = pack_params(params, matmul_dtype=jnp.bfloat16)

    # 1) Small smoke test: single grid step, one 128-lane chunk, padded lanes path.
    x_small = jax.random.normal(k_small, (8, 1), jnp.float32)
    out_small = jax.block_until_ready(mlp_forward(x_small, packed, w2, w3))
    ref_small = reference_matched(x_small, params)
    assert out_small.shape == (8, 1)
    assert jnp.allclose(out_small, ref_small, atol=1e-4, rtol=1e-4)

    # 2) Multi-tile, exact fit: grid=2 (one block per TensorCore on v7x),
    #    2 x 512-lane inner chunks per block, no padding.
    x_mid = jax.random.normal(k_mid, (4096, 1), jnp.float32)
    out_mid = jax.block_until_ready(mlp_forward(x_mid, packed, w2, w3))
    ref_mid = reference_matched(x_mid, params)
    assert out_mid.shape == (4096, 1)
    assert jnp.allclose(out_mid, ref_mid, atol=1e-4, rtol=1e-4)

    # 3) Ragged batch: grid=3 with a padded final block; also sanity-check against the
    #    full-f32 reference with a bf16-appropriate tolerance.
    x_big = jax.random.normal(k_big, (5000, 1), jnp.float32)
    out_big = jax.block_until_ready(mlp_forward(x_big, packed, w2, w3))
    ref_big = reference_matched(x_big, params)
    ref_big_f32 = reference_f32(x_big, params)
    assert out_big.shape == (5000, 1)
    assert jnp.allclose(out_big, ref_big, atol=1e-4, rtol=1e-4)
    assert jnp.allclose(out_big, ref_big_f32, atol=5e-2, rtol=5e-2)

    print("KERNEL_OK")
</pallas_src>

<mosaic_0001>
module attributes {stable_mosaic.version = 11 : i64} {
  func.func @mlp_kernel(%arg0: i32, %arg1: memref<1x128xf32, #tpu.memory_space<vmem>>, %arg2: memref<32x8xf32, #tpu.memory_space<vmem>>, %arg3: memref<32x32xbf16, #tpu.memory_space<vmem>>, %arg4: memref<32x32xbf16, #tpu.memory_space<vmem>>, %arg5: memref<1x128xf32, #tpu.memory_space<vmem>>) attributes {dimension_semantics = [#tpu.dimension_semantics<parallel>], iteration_bounds = array<i64: 1>, scalar_prefetch = 0 : i64, scratch_operands = 0 : i64, tpu.core_type = #tpu.core_type<tc>, window_params = [{transform_indices = @transform_0, window_bounds = array<i64: 1, 128>}, {pipeline_mode = #tpu.pipeline_mode<synchronous>, transform_indices = @transform_1, window_bounds = array<i64: 32, 8>}, {pipeline_mode = #tpu.pipeline_mode<synchronous>, transform_indices = @transform_2, window_bounds = array<i64: 32, 32>}, {pipeline_mode = #tpu.pipeline_mode<synchronous>, transform_indices = @transform_3, window_bounds = array<i64: 32, 32>}, {transform_indices = @transform_4, window_bounds = array<i64: 1, 128>}]} {
    %c0 = arith.constant 0 : index
    %c0_0 = arith.constant 0 : index
    %0 = vector.load %arg2[%c0, %c0_0] : memref<32x8xf32, #tpu.memory_space<vmem>>, vector<32x8xf32>
    %1 = vector.extract_strided_slice %0 {offsets = [0, 0], sizes = [32, 1], strides = [1, 1]} : vector<32x8xf32> to vector<32x1xf32>
    %2 = vector.extract_strided_slice %0 {offsets = [0, 1], sizes = [32, 1], strides = [1, 1]} : vector<32x8xf32> to vector<32x1xf32>
    %3 = vector.extract_strided_slice %0 {offsets = [0, 2], sizes = [32, 1], strides = [1, 1]} : vector<32x8xf32> to vector<32x1xf32>
    %4 = vector.extract_strided_slice %0 {offsets = [0, 3], sizes = [32, 1], strides = [1, 1]} : vector<32x8xf32> to vector<32x1xf32>
    %5 = vector.extract_strided_slice %0 {offsets = [0, 4], sizes = [32, 1], strides = [1, 1]} : vector<32x8xf32> to vector<32x1xf32>
    %6 = vector.extract_strided_slice %0 {offsets = [0, 5], sizes = [1, 1], strides = [1, 1]} : vector<32x8xf32> to vector<1x1xf32>
    %c0_1 = arith.constant 0 : index
    %c0_2 = arith.constant 0 : index
    %7 = vector.load %arg3[%c0_1, %c0_2] : memref<32x32xbf16, #tpu.memory_space<vmem>>, vector<32x32xbf16>
    %c0_3 = arith.constant 0 : index
    %c0_4 = arith.constant 0 : index
    %8 = vector.load %arg4[%c0_3, %c0_4] : memref<32x32xbf16, #tpu.memory_space<vmem>>, vector<32x32xbf16>
    %c0_i32 = arith.constant 0 : i32
    %c128_i32 = arith.constant 128 : i32
    %9 = arith.muli %c0_i32, %c128_i32 : i32
    %10 = tpu.assume_multiple %9, 128 : i32
    %c0_5 = arith.constant 0 : index
    %11 = arith.index_cast %10 : i32 to index
    %12 = vector.load %arg1[%c0_5, %11] : memref<1x128xf32, #tpu.memory_space<vmem>>, vector<1x128xf32>
    %13 = vector.broadcast %1 : vector<32x1xf32> to vector<32x128xf32>
    %14 = vector.broadcast %12 : vector<1x128xf32> to vector<32x128xf32>
    %15 = arith.mulf %13, %14 : vector<32x128xf32>
    %16 = vector.broadcast %2 : vector<32x1xf32> to vector<32x128xf32>
    %17 = arith.addf %15, %16 : vector<32x128xf32>
    %cst = arith.constant 0.000000e+00 : f32
    %18 = vector.broadcast %cst : f32 to vector<32x128xf32>
    %19 = arith.maximumf %17, %18 : vector<32x128xf32>
    %20 = arith.truncf %19 : vector<32x128xf32> to vector<32x128xbf16>
    %cst_6 = arith.constant dense<0.000000e+00> : vector<32x128xf32>
    %21 = tpu.matmul %7, %20, %cst_6 {dimension_numbers = #tpu.dot_dimension_numbers<[1], [0], [0], [1], [0, 0, 1, 1], [], []>} : vector<32x32xbf16>, vector<32x128xbf16>, vector<32x128xf32> -> vector<32x128xf32>
    %22 = vector.broadcast %3 : vector<32x1xf32> to vector<32x128xf32>
    %23 = arith.addf %21, %22 : vector<32x128xf32>
    %cst_7 = arith.constant 0.000000e+00 : f32
    %24 = vector.broadcast %cst_7 : f32 to vector<32x128xf32>
    %25 = arith.maximumf %23, %24 : vector<32x128xf32>
    %26 = arith.truncf %25 : vector<32x128xf32> to vector<32x128xbf16>
    %cst_8 = arith.constant dense<0.000000e+00> : vector<32x128xf32>
    %27 = tpu.matmul %8, %26, %cst_8 {dimension_numbers = #tpu.dot_dimension_numbers<[1], [0], [0], [1], [0, 0, 1, 1], [], []>} : vector<32x32xbf16>, vector<32x128xbf16>, vector<32x128xf32> -> vector<32x128xf32>
    %28 = vector.broadcast %4 : vector<32x1xf32> to vector<32x128xf32>
    %29 = arith.addf %27, %28 : vector<32x128xf32>
    %cst_9 = arith.constant 0.000000e+00 : f32
    %30 = vector.broadcast %cst_9 : f32 to vector<32x128xf32>
    %31 = arith.maximumf %29, %30 : vector<32x128xf32>
    %32 = vector.broadcast %5 : vector<32x1xf32> to vector<32x128xf32>
    %33 = arith.mulf %32, %31 : vector<32x128xf32>
    %cst_10 = arith.constant dense<0.000000e+00> : vector<128xf32>
    %34 = vector.multi_reduction <add>, %33, %cst_10 [0] : vector<32x128xf32> to vector<128xf32>
    %35 = vector.shape_cast %34 : vector<128xf32> to vector<1x128xf32>
    %36 = vector.broadcast %6 : vector<1x1xf32> to vector<1x128xf32>
    %37 = arith.addf %35, %36 : vector<1x128xf32>
    %c0_11 = arith.constant 0 : index
    %38 = arith.index_cast %10 : i32 to index
    %39 = vector.load %arg5[%c0_11, %38] : memref<1x128xf32, #tpu.memory_space<vmem>>, vector<1x128xf32>
    tpu.vector_store %arg5[%c0_11, %38], %37 {strides = array<i32>} : memref<1x128xf32, #tpu.memory_space<vmem>>, vector<1x128xf32>,
    %c1_i32 = arith.constant 1 : i32
    return
  }
  func.func @transform_0(%arg0: i32) -> (i32, i32) {
    %c0_i32 = arith.constant 0 : i32
    %c0_i32_0 = arith.constant 0 : i32
    return %c0_i32, %arg0 : i32, i32
  }
  func.func @transform_1(%arg0: i32) -> (i32, i32) {
    %c0_i32 = arith.constant 0 : i32
    %c0_i32_0 = arith.constant 0 : i32
    %c0_i32_1 = arith.constant 0 : i32
    return %c0_i32, %c0_i32_0 : i32, i32
  }
  func.func @transform_2(%arg0: i32) -> (i32, i32) {
    %c0_i32 = arith.constant 0 : i32
    %c0_i32_0 = arith.constant 0 : i32
    %c0_i32_1 = arith.constant 0 : i32
    return %c0_i32, %c0_i32_0 : i32, i32
  }
  func.func @transform_3(%arg0: i32) -> (i32, i32) {
    %c0_i32 = arith.constant 0 : i32
    %c0_i32_0 = arith.constant 0 : i32
    %c0_i32_1 = arith.constant 0 : i32
    return %c0_i32, %c0_i32_0 : i32, i32
  }
  func.func @transform_4(%arg0: i32) -> (i32, i32) {
    %c0_i32 = arith.constant 0 : i32
    %c0_i32_0 = arith.constant 0 : i32
    return %c0_i32, %arg0 : i32, i32
  }
}

</mosaic_0001>

<llo_original>
// kernel: tpu_custom_call.1
$region0: #{tpu_custom_call.1}
  #allocation0 [shape = 'u32[]', space=smem, size = 0x4, offset = 0x4, fixed_abs, tag = 'smem constant byte address 0x4 - core index']
  #allocation1 [shape = 'u32[144,128]{1,0:T(1,128)}', space=vmem, size = 0x12000, scoped, tag = 'internal scratch']
  %s0 = inlined_call_operand.vmem [shape: f32[1,128], index: 0, kind: input, shape index: {}]
  %s1 = inlined_call_operand.vmem [shape: f32[32,8], index: 1, kind: input, shape index: {}]
  %s2 = inlined_call_operand.vmem [shape: bf16[32,32], index: 2, kind: input, shape index: {}]
  %s3 = inlined_call_operand.vmem [shape: bf16[32,32], index: 3, kind: input, shape index: {}]
  %s4 = inlined_call_operand.hbm [shape: f32[1,128], index: 4, kind: output, shape index: {}]
  %s5 = sld [smem:[#allocation0]]
  $region26: #{tpu_custom_call.1} parent=0
    _
  %s7 = ssub.s32 1, %s5
  %s8 = scalar_select 0, %s7, %s5
  $region1: #{tpu_custom_call.1} parent=0
    #allocation2 [shape = 'u8[512]{0}', space=vmem, size = 0x400, scoped, tag = 'output window, operand 0, single buffered']
    #allocation3 [shape = 's32[1]{0}', space=sflag, size = 0x4, scoped, tag = 'scoped memory for tpu_custom_call.1']
    %9 = vsyncpa [#allocation3], 0
    // Predicated region
    $region2: #{tpu_custom_call.1} parent=1 // pred_check
      _
    $region3: #{tpu_custom_call.1} parent=1 // pred_check_branch
      %11 = sbr.rel (0) target = $region5
    $region4: #{tpu_custom_call.1} parent=1 // pred_region
      _
    $region5: #{tpu_custom_call.1} parent=1 // pred_fallthru
      _
    // Predicated region
    $region6: #{tpu_custom_call.1} parent=1 // pred_check
      _
    $region7: #{tpu_custom_call.1} parent=1 // pred_check_branch
      %13 = sbr.rel (0) target = $region9
    $region8: #{tpu_custom_call.1} parent=1 // pred_region
      _
    $region9: #{tpu_custom_call.1} parent=1 // pred_fallthru
      _
    // Predicated region
    $region10: #{tpu_custom_call.1} parent=1 // pred_check
      _
    $region11: #{tpu_custom_call.1} parent=1 // pred_check_branch
      %15 = sbr.rel (0) target = $region13
    $region12: #{tpu_custom_call.1} parent=1 // pred_region
      _
    $region13: #{tpu_custom_call.1} parent=1 // pred_fallthru
      _
    // Predicated region
    $region14: #{tpu_custom_call.1} parent=1 // pred_check
      _
    $region15: #{tpu_custom_call.1} parent=1 // pred_check_branch
      %17 = sbr.rel (0) target = $region17
    $region16: #{tpu_custom_call.1} parent=1 // pred_region
      _
    $region17: #{tpu_custom_call.1} parent=1 // pred_fallthru
      _
    %v19 = vld [vmem:[%s1] sm:$0xff]
    %v20 = vld [vmem:[%s1 + $0x8] sm:$0xff]
    %v21 = vld [vmem:[%s1 + $0x10] sm:$0xff]
    %v22 = vld [vmem:[%s1 + $0x18] sm:$0xff]
    %v23 = vld [vmem:[%s2] sm:$0xf]
    %v24 = vld [vmem:[%s2 + $0x4] sm:$0xf]
    %v25 = vld [vmem:[%s2 + $0x8] sm:$0xf]
    %v26 = vld [vmem:[%s2 + $0xc] sm:$0xf]
    %v27 = vld [vmem:[%s3] sm:$0xf]
    %v28 = vld [vmem:[%s3 + $0x4] sm:$0xf]
    %v29 = vld [vmem:[%s3 + $0x8] sm:$0xf]
    %v30 = vld [vmem:[%s3 + $0xc] sm:$0xf]
    %v31 = vld [vmem:[%s0] sm:$0x1]
    %33 = vset.pattern.permute.xlu0 0
    %34 = vperm.xlu0 %33, %v19
    %v35 = vpop.permute.xlu0 %34
    %38 = vset.pattern.permute.xlu0 0
    %39 = vperm.xlu0 %38, %v20
    %v40 = vpop.permute.xlu0 %39
    %43 = vset.pattern.permute.xlu0 0
    %44 = vperm.xlu0 %43, %v21
    %v45 = vpop.permute.xlu0 %44
    %48 = vset.pattern.permute.xlu0 0
    %49 = vperm.xlu0 %48, %v22
    %v50 = vpop.permute.xlu0 %49
    %v53 = vlaneseq
    %v54 = vshrl.u32 %v53, 7
    %v55 = vsub.s32 0, %v54
    %v56 = vrot.slane %v31, %v55
    %v58 = vmul.f32 %v35, %v56
    %v59 = vmul.f32 %v40, %v56
    %v60 = vmul.f32 %v45, %v56
    %v61 = vmul.f32 %v50, %v56
    %62 = vset.pattern.permute.xlu0 1
    %63 = vperm.xlu0 %62, %v19
    %v64 = vpop.permute.xlu0 %63
    %66 = vset.pattern.permute.xlu0 1
    %67 = vperm.xlu0 %66, %v20
    %v68 = vpop.permute.xlu0 %67
    %70 = vset.pattern.permute.xlu0 1
    %71 = vperm.xlu0 %70, %v21
    %v72 = vpop.permute.xlu0 %71
    %74 = vset.pattern.permute.xlu0 1
    %75 = vperm.xlu0 %74, %v22
    %v76 = vpop.permute.xlu0 %75
    %v78 = vadd.f32 %v58, %v64
    %v79 = vadd.f32 %v59, %v68
    %v80 = vadd.f32 %v60, %v72
    %v81 = vadd.f32 %v61, %v76
    %v82 = vmax.f32 %v78, 0.0
    %v83 = vmax.f32 %v79, 0.0
    %v84 = vmax.f32 %v80, 0.0
    %v85 = vmax.f32 %v81, 0.0
    %v86 = vpack.c.bf16 %v83, %v82
    %v87 = vpack.c.bf16 %v85, %v84
    %88 = vset.pattern.permute.xlu0 2
    %89 = vperm.xlu0 %88, %v19
    %v90 = vpop.permute.xlu0 %89
    %92 = vset.pattern.permute.xlu0 2
    %93 = vperm.xlu0 %92, %v20
    %v94 = vpop.permute.xlu0 %93
    %96 = vset.pattern.permute.xlu0 2
    %97 = vperm.xlu0 %96, %v21
    %v98 = vpop.permute.xlu0 %97
    %100 = vset.pattern.permute.xlu0 2
    %101 = vperm.xlu0 %100, %v22
    %v102 = vpop.permute.xlu0 %101
    %v108 = vunpack.c.l.b16 %v23
    %v109 = vunpack.c.l.b16 %v24
    %v110 = vunpack.c.l.b16 %v25
    %v111 = vunpack.c.l.b16 %v26
    %v112 = vpack.c.b16 %v109, %v108
    %v113 = vpack.c.b16 %v111, %v110
    %vm114 = vcmask 261120
    %v116 = vsel %vm114, %v112, 0
    %v119 = vsel %vm114, %v113, 0
    %121 = vmatprep.subr.bf16.mxu0 0
    %122 = vmatpush1.bf16.msra.mxu0 0
    %123 = vmatprep.subr.bf16.mxu0 0
    %124 = vmatpush1.bf16.msra.mxu0 0
    %125 = vmatprep.subr.bf16.mxu0 0
    %126 = vmatpush1.bf16.msra.mxu0 0
    %127 = vmatprep.subr.bf16.mxu0 0
    %128 = vmatpush1.bf16.msra.mxu0 0
    %129 = vmatprep.subr.bf16.mxu0 0
    %130 = vmatpush1.bf16.msra.mxu0 0
    %131 = vmatprep.subr.bf16.mxu0 0
    %132 = vmatpush1.bf16.msra.mxu0 0
    %133 = vmatprep.subr.bf16.mxu0 0
    %134 = vmatpush1.bf16.msra.mxu0 %v87
    %135 = vmatprep.subr.bf16.mxu0 0
    %136 = vmatpush1.bf16.msra.mxu0 %v86
    %137 = vmatprep.subr.bf16.mxu0 0
    %138 = vmatpush2.bf16.msra.mxu0 0
    %139 = vmatprep.subr.bf16.mxu0 0
    %140 = vmatpush2.bf16.msra.mxu0 0
    %141 = vmatprep.subr.bf16.mxu0 0
    %142 = vmatpush2.bf16.msra.mxu0 0
    %143 = vmatprep.subr.bf16.mxu0 0
    %144 = vmatpush2.bf16.msra.mxu0 0
    %145 = vmatprep.subr.bf16.mxu0 0
    %146 = vmatpush2.bf16.msra.mxu0 0
    %147 = vmatprep.subr.bf16.mxu0 0
    %148 = vmatpush2.bf16.msra.mxu0 0
    %149 = vmatprep.subr.bf16.mxu0 0
    %150 = vmatpush2.bf16.msra.mxu0 0
    %151 = vmatprep.subr.bf16.mxu0 0
    %152 = vmatpush2.bf16.msra.mxu0 0
    %153 = vmatprep.mubr.bf16.mxu0 0
    %154 = vmatmul.mubr.bf16.gmra.mxu0 %v116
    %v155 = vpop.f32.mrf.mxu0
    %v156 = vadd.f32 %v90, %v155
    %v157 = vpop.f32.mrf.mxu0
    %v158 = vpop.f32.mrf.mxu0
    %v159 = vadd.f32 %v94, %v158
    %v160 = vpop.f32.mrf.mxu0
    %161 = vmatprep.mubr.bf16.mxu0 0
    %162 = vmatmul.mubr.bf16.gmra.mxu0 %v119
    %v163 = vpop.f32.mrf.mxu0
    %v164 = vadd.f32 %v98, %v163
    %v165 = vpop.f32.mrf.mxu0
    %v166 = vpop.f32.mrf.mxu0
    %v167 = vadd.f32 %v102, %v166
    %v168 = vpop.f32.mrf.mxu0
    %169 = vdwg.mxu0
    %v170 = vmax.f32 %v156, 0.0
    %v171 = vmax.f32 %v159, 0.0
    %v172 = vmax.f32 %v164, 0.0
    %v173 = vmax.f32 %v167, 0.0
    %v174 = vpack.c.bf16 %v171, %v170
    %v175 = vpack.c.bf16 %v173, %v172
    %176 = vset.pattern.permute.xlu0 3
    %177 = vperm.xlu0 %176, %v19
    %v178 = vpop.permute.xlu0 %177
    %180 = vset.pattern.permute.xlu0 3
    %181 = vperm.xlu0 %180, %v20
    %v182 = vpop.permute.xlu0 %181
    %184 = vset.pattern.permute.xlu0 3
    %185 = vperm.xlu0 %184, %v21
    %v186 = vpop.permute.xlu0 %185
    %188 = vset.pattern.permute.xlu0 3
    %189 = vperm.xlu0 %188, %v22
    %v190 = vpop.permute.xlu0 %189
    %v196 = vunpack.c.l.b16 %v27
    %v197 = vunpack.c.l.b16 %v28
    %v198 = vunpack.c.l.b16 %v29
    %v199 = vunpack.c.l.b16 %v30
    %v200 = vpack.c.b16 %v197, %v196
    %v201 = vpack.c.b16 %v199, %v198
    %v203 = vsel %vm114, %v200, 0
    %v206 = vsel %vm114, %v201, 0
    %208 = vmatprep.subr.bf16.mxu0 0
    %209 = vmatpush1.bf16.msra.mxu0 0
    %210 = vmatprep.subr.bf16.mxu0 0
    %211 = vmatpush1.bf16.msra.mxu0 0
    %212 = vmatprep.subr.bf16.mxu0 0
    %213 = vmatpush1.bf16.msra.mxu0 0
    %214 = vmatprep.subr.bf16.mxu0 0
    %215 = vmatpush1.bf16.msra.mxu0 0
    %216 = vmatprep.subr.bf16.mxu0 0
    %217 = vmatpush1.bf16.msra.mxu0 0
    %218 = vmatprep.subr.bf16.mxu0 0
    %219 = vmatpush1.bf16.msra.mxu0 0
    %220 = vmatprep.subr.bf16.mxu0 0
    %221 = vmatpush1.bf16.msra.mxu0 %v175
    %222 = vmatprep.subr.bf16.mxu0 0
    %223 = vmatpush1.bf16.msra.mxu0 %v174
    %224 = vmatprep.subr.bf16.mxu0 0
    %225 = vmatpush2.bf16.msra.mxu0 0
    %226 = vmatprep.subr.bf16.mxu0 0
    %227 = vmatpush2.bf16.msra.mxu0 0
    %228 = vmatprep.subr.bf16.mxu0 0
    %229 = vmatpush2.bf16.msra.mxu0 0
    %230 = vmatprep.subr.bf16.mxu0 0
    %231 = vmatpush2.bf16.msra.mxu0 0
    %232 = vmatprep.subr.bf16.mxu0 0
    %233 = vmatpush2.bf16.msra.mxu0 0
    %234 = vmatprep.subr.bf16.mxu0 0
    %235 = vmatpush2.bf16.msra.mxu0 0
    %236 = vmatprep.subr.bf16.mxu0 0
    %237 = vmatpush2.bf16.msra.mxu0 0
    %238 = vmatprep.subr.bf16.mxu0 0
    %239 = vmatpush2.bf16.msra.mxu0 0
    %240 = vmatprep.mubr.bf16.mxu0 0
    %241 = vmatmul.mubr.bf16.gmra.mxu0 %v203
    %v242 = vpop.f32.mrf.mxu0
    %v243 = vadd.f32 %v178, %v242
    %v244 = vpop.f32.mrf.mxu0
    %v245 = vpop.f32.mrf.mxu0
    %v246 = vadd.f32 %v182, %v245
    %v247 = vpop.f32.mrf.mxu0
    %248 = vmatprep.mubr.bf16.mxu0 0
    %249 = vmatmul.mubr.bf16.gmra.mxu0 %v206
    %v250 = vpop.f32.mrf.mxu0
    %v251 = vadd.f32 %v186, %v250
    %v252 = vpop.f32.mrf.mxu0
    %v253 = vpop.f32.mrf.mxu0
    %v254 = vadd.f32 %v190, %v253
    %v255 = vpop.f32.mrf.mxu0
    %256 = vdwg.mxu0
    %v257 = vmax.f32 %v243, 0.0
    %v258 = vmax.f32 %v246, 0.0
    %v259 = vmax.f32 %v251, 0.0
    %v260 = vmax.f32 %v254, 0.0
    %261 = vset.pattern.permute.xlu0 4
    %262 = vperm.xlu0 %261, %v19
    %v263 = vpop.permute.xlu0 %262
    %265 = vset.pattern.permute.xlu0 4
    %266 = vperm.xlu0 %265, %v20
    %v267 = vpop.permute.xlu0 %266
    %269 = vset.pattern.permute.xlu0 4
    %270 = vperm.xlu0 %269, %v21
    %v271 = vpop.permute.xlu0 %270
    %273 = vset.pattern.permute.xlu0 4
    %274 = vperm.xlu0 %273, %v22
    %v275 = vpop.permute.xlu0 %274
    %v277 = vmul.f32 %v263, %v257
    %v278 = vmul.f32 %v267, %v258
    %v279 = vmul.f32 %v271, %v259
    %v280 = vmul.f32 %v275, %v260
    %v281 = vadd.f32 %v277, %v278
    %v282 = vadd.f32 %v281, %v279
    %v283 = vadd.f32 %v282, %v280
    %v284 = vrot.slane %v283, 4
    %v285 = vadd.f32 %v283, %v284
    %v286 = vrot.slane %v285, 2
    %v287 = vadd.f32 %v285, %v286
    %v288 = vrot.slane %v287, 1
    %v289 = vadd.f32 %v287, %v288
    %290 = vset.pattern.permute.xlu0 5
    %291 = vperm.xlu0 %290, %v19
    %v292 = vpop.permute.xlu0 %291
    %v294 = vadd.f32 %v289, %v292
    %295 = vst [vmem:[#allocation2] sm:$0x1] %v294
    // Predicated region
    $region18: #{tpu_custom_call.1} parent=1 // pred_check
      _
    $region19: #{tpu_custom_call.1} parent=1 // pred_check_branch
      %297 = sbr.rel (0) target = $region21
    $region20: #{tpu_custom_call.1} parent=1 // pred_region
      %s299 = ssub.s32 16, 16
      %300 = vsyncadd [#allocation3], %s299
      %s302 = sshll.u32 [#allocation2], 4
      %s303 = int_to_ptr.vmem [resolvable:$true] %s302
      %305 = dma.vmem_to_hbm [thread:$0]  %s303, 16, %s4, [#allocation3]
    $region21: #{tpu_custom_call.1} parent=1 // pred_fallthru
      _
    // Predicated region
    $region22: #{tpu_custom_call.1} parent=1 // pred_check
      _
    $region23: #{tpu_custom_call.1} parent=1 // pred_check_branch
      %307 = sbr.rel (0) target = $region25
    $region24: #{tpu_custom_call.1} parent=1 // pred_region
      %308 = dma.done [#allocation3], 16
    $region25: #{tpu_custom_call.1} parent=1 // pred_fallthru
      _
    %309 = vsyncpa [#allocation3], 1

</llo_original>
